<compile_context>
chip_gen: v7x
topology: tpu7x:2x2x1
jax: 0.10.0
libtpu: 0.0.40
codegen_flags: <defaults>
</compile_context>

<pallas_src>
import functools

import jax
import jax.numpy as jnp
from jax.experimental import pallas as pl
from jax.experimental.pallas import tpu as pltpu


_NEG_BIG = -1e30  # effectively -inf for masked columns, but NaN-safe


def _round_up(a: int, b: int) -> int:
    return ((a + b - 1) // b) * b


def _cdiv(a: int, b: int) -> int:
    return (a + b - 1) // b


def _proj_softmax_kernel(x_ref, w_ref, b_ref, e_ref, m_ref, l_ref, msnap_ref,
                         *, vocab, tn, mask_cols, fuse_normalize):
    """Pass 1: logits tile on the MXU + online softmax statistics.

    x_ref: (tm, d)   w_ref: (d, tn)   b_ref: (1, tn) f32
    e_ref: (tm, tn)  unnormalized exp tile (or normalized if fuse_normalize)
    m_ref, l_ref: (tm, 1) f32 running stats, resident across the vocab axis
    msnap_ref: (1, tm, 1) f32 snapshot of the running max for this vocab tile
    """
    j = pl.program_id(1)

    @pl.when(j == 0)
    def _():
        m_ref[...] = jnp.full(m_ref.shape, _NEG_BIG, m_ref.dtype)
        l_ref[...] = jnp.zeros(l_ref.shape, l_ref.dtype)

    z = jnp.dot(x_ref[...], w_ref[...], preferred_element_type=jnp.float32)
    z = z + b_ref[...]

    if mask_cols:
        # Ragged last vocab tile: mask out-of-range columns here instead of
        # padding the (d_model, vocab) weight matrix in HBM.
        col = j * tn + jax.lax.broadcasted_iota(jnp.int32, z.shape, 1)
        z = jnp.where(col < vocab, z, _NEG_BIG)

    m_prev = m_ref[...]
    m_new = jnp.maximum(m_prev, jnp.max(z, axis=-1, keepdims=True))
    e = jnp.exp(z - m_new)
    l_new = l_ref[...] * jnp.exp(m_prev - m_new) + jnp.sum(e, axis=-1, keepdims=True)
    l_ref[...] = l_new
    m_ref[...] = m_new
    msnap_ref[...] = m_new[None]

    if fuse_normalize:           # single vocab tile -> stats already final
        e = e * (1.0 / l_new)    # exact divide: rows sum to 1 to f32 rounding
    e_ref[...] = e.astype(e_ref.dtype)


def _rescale_kernel(e_ref, m_ref, l_ref, msnap_ref, o_ref):
    """Pass 2: pure elementwise in-place rescale (no matmul recompute)."""
    scale = jnp.exp(msnap_ref[0] - m_ref[...]) * (1.0 / l_ref[...])
    o_ref[...] = (e_ref[...].astype(jnp.float32) * scale).astype(o_ref.dtype)


@functools.partial(jax.jit,
                   static_argnames=("tm", "tn", "use_bf16_matmul", "out_dtype"))
def generator_forward(x, w, b, *, tm=1024, tn=512, use_bf16_matmul=True,
                      out_dtype=jnp.bfloat16):
    """x: (B, S, d_model), w: (d_model, vocab), b: (vocab,) -> (B, S, vocab)."""
    B, S, d_model = x.shape
    vocab = w.shape[1]
    M = B * S

    # ---- vocab tiling: never pad/copy the weight; mask the ragged tail tile.
    tn_base = _round_up(max(tn, 128), 128)
    if vocab <= tn_base:
        tn_eff, nj = vocab, 1                 # full-dim block (always legal)
    else:
        tn_eff, nj = tn_base, _cdiv(vocab, tn_base)
    mask_cols = (nj > 1) and (vocab % tn_eff != 0)

    # ---- row tiling: big tile for MXU arithmetic intensity, but keep >= 2 row
    # tiles when possible so megacore / both v7x TensorCores get work.
    tm_req = _round_up(max(tm, 8), 8)
    tm_cap = _round_up(_cdiv(M, 2), 8) if M > 8 else _round_up(M, 8)
    tm_eff = min(tm_req, tm_cap)

    in_dtype = jnp.bfloat16 if use_bf16_matmul else jnp.float32
    in_bytes = jnp.dtype(in_dtype).itemsize
    out_bytes = jnp.dtype(out_dtype).itemsize

    # ---- VMEM budget: per-generation cap with headroom; shrink tm if needed.
    try:
        vmem_cap = int(pltpu.get_tpu_info().vmem_capacity_bytes)
    except Exception:
        vmem_cap = 64 << 20
    budget = (vmem_cap * 3) // 4              # ~48 MiB v7x, ~96 MiB v5e/v6e

    def _step_bytes(tm_):
        return (2 * (tm_ * d_model + d_model * tn_eff) * in_bytes  # x, w dbl-buf
                + 2 * tn_eff * 4                                   # bias
                + 2 * tm_ * tn_eff * out_bytes                     # e / out tile
                + 6 * tm_ * 4                                      # m, l, msnap
                + 4 * tm_ * tn_eff * 4)                            # f32 z/exp temps

    while tm_eff > 128 and _step_bytes(tm_eff) > budget:
        tm_eff = max(128, _round_up(tm_eff // 2, 8))
    vmem_limit = int(min(max(_step_bytes(tm_eff) + (16 << 20), 32 << 20), budget))

    M_pad = _round_up(M, tm_eff)
    grid = (M_pad // tm_eff, nj)

    x2 = x.reshape(M, d_model)
    if M_pad != M:
        x2 = jnp.pad(x2, ((0, M_pad - M), (0, 0)))   # zero rows, sliced off later
    x2 = x2.astype(in_dtype)
    # TODO(synk): real models should pass pre-cast bf16 weights so this cast
    # (a full extra weight HBM pass) is not repeated every forward call.
    w_c = w if w.dtype == in_dtype else w.astype(in_dtype)
    b2 = b.reshape(1, vocab).astype(jnp.float32)

    x_spec = pl.BlockSpec((tm_eff, d_model), lambda i, j: (i, 0))
    w_spec = pl.BlockSpec((d_model, tn_eff), lambda i, j: (0, j))
    b_spec = pl.BlockSpec((1, tn_eff), lambda i, j: (0, j))
    e_spec = pl.BlockSpec((tm_eff, tn_eff), lambda i, j: (i, j))
    stat_spec = pl.BlockSpec((tm_eff, 1), lambda i, j: (i, 0))
    msnap_spec = pl.BlockSpec((1, tm_eff, 1), lambda i, j: (j, i, 0))

    kernel1 = functools.partial(_proj_softmax_kernel, vocab=vocab, tn=tn_eff,
                                mask_cols=mask_cols, fuse_normalize=(nj == 1))

    # ---- Pass 1: matmul + exp + online stats (weight streamed exactly once) --
    e_arr, m_arr, l_arr, msnap_arr = pl.pallas_call(
        kernel1,
        out_shape=(jax.ShapeDtypeStruct((M_pad, vocab), out_dtype),
                   jax.ShapeDtypeStruct((M_pad, 1), jnp.float32),
                   jax.ShapeDtypeStruct((M_pad, 1), jnp.float32),
                   jax.ShapeDtypeStruct((nj, M_pad, 1), jnp.float32)),
        grid_spec=pltpu.PrefetchScalarGridSpec(
            num_scalar_prefetch=0, grid=grid,
            in_specs=[x_spec, w_spec, b_spec],
            out_specs=[e_spec, stat_spec, stat_spec, msnap_spec]),
        compiler_params=pltpu.CompilerParams(
            dimension_semantics=("parallel", "arbitrary"),
            vmem_limit_bytes=vmem_limit),
    )(x2, w_c, b2)

    if nj == 1:
        probs = e_arr                         # already normalized in pass 1
    else:
        # ---- Pass 2: in-place elementwise rescale (mem-bound, no recompute) --
        probs = pl.pallas_call(
            _rescale_kernel,
            out_shape=jax.ShapeDtypeStruct((M_pad, vocab), out_dtype),
            grid_spec=pltpu.PrefetchScalarGridSpec(
                num_scalar_prefetch=0, grid=grid,
                in_specs=[e_spec, stat_spec, stat_spec, msnap_spec],
                out_specs=e_spec),
            input_output_aliases={0: 0},      # update the prob buffer in place
            compiler_params=pltpu.CompilerParams(
                dimension_semantics=("parallel", "parallel"),
                vmem_limit_bytes=vmem_limit),
        )(e_arr, m_arr, l_arr, msnap_arr)

    if M_pad != M:
        probs = probs[:M]                     # only row padding is ever sliced
    return probs.reshape(B, S, vocab)


def _reference(x, w, b, use_bf16_matmul=True):
    if use_bf16_matmul:
        x = x.astype(jnp.bfloat16)
        w = w.astype(jnp.bfloat16)
    logits = jnp.einsum("bsd,dv->bsv", x, w,
                        preferred_element_type=jnp.float32) + b
    return jax.nn.softmax(logits.astype(jnp.float32), axis=-1)


if __name__ == "__main__":
    # Shapes implied by the module: d_model-dim embeddings -> vocab logits.
    B, S, d_model, vocab = 2, 8, 32, 128

    key = jax.random.PRNGKey(0)
    kx, kw, kb = jax.random.split(key, 3)
    x = jax.random.normal(kx, (B, S, d_model), dtype=jnp.float32)
    # PyTorch nn.Linear(d_model, vocab) stores weight as (vocab, d_model);
    # we keep its transpose so the kernel needs no transpose.
    w = (jax.random.normal(kw, (d_model, vocab), dtype=jnp.float32)
         / jnp.sqrt(jnp.float32(d_model)))
    b = jax.random.normal(kb, (vocab,), dtype=jnp.float32) * 0.01

    out = generator_forward(x, w, b)          # single-vocab-tile fused path
    jax.block_until_ready(out)
    ref = _reference(x, w, b)
    assert out.shape == (B, S, vocab)
    assert jnp.allclose(out.astype(jnp.float32), ref, atol=5e-3, rtol=5e-3)
    assert jnp.allclose(jnp.sum(out.astype(jnp.float32), axis=-1), 1.0, atol=1e-2)

    # Second case exercises the two-pass rescale path (2 vocab tiles with
    # input_output_aliases), the ragged-tile in-kernel masking and row padding.
    B2, S2, d2, v2 = 2, 5, 32, 200
    k2x, k2w, k2b = jax.random.split(jax.random.PRNGKey(1), 3)
    x2 = jax.random.normal(k2x, (B2, S2, d2), dtype=jnp.float32)
    w2 = (jax.random.normal(k2w, (d2, v2), dtype=jnp.float32)
          / jnp.sqrt(jnp.float32(d2)))
    b2 = jax.random.normal(k2b, (v2,), dtype=jnp.float32) * 0.01

    out2 = generator_forward(x2, w2, b2, tn=128)   # force 2 vocab tiles
    jax.block_until_ready(out2)
    ref2 = _reference(x2, w2, b2)
    assert out2.shape == (B2, S2, v2)
    assert jnp.allclose(out2.astype(jnp.float32), ref2, atol=5e-3, rtol=5e-3)
    assert jnp.allclose(jnp.sum(out2.astype(jnp.float32), axis=-1), 1.0, atol=1e-2)

    print("KERNEL_OK")
</pallas_src>

<mosaic_0001>
module attributes {stable_mosaic.version = 11 : i64} {
  func.func @_proj_softmax_kernel(%arg0: i32, %arg1: i32, %arg2: memref<8x32xbf16, #tpu.memory_space<vmem>>, %arg3: memref<32x128xbf16, #tpu.memory_space<vmem>>, %arg4: memref<1x128xf32, #tpu.memory_space<vmem>>, %arg5: memref<8x128xbf16, #tpu.memory_space<vmem>>, %arg6: memref<8x1xf32, #tpu.memory_space<vmem>>, %arg7: memref<8x1xf32, #tpu.memory_space<vmem>>, %arg8: memref<1x8x1xf32, #tpu.memory_space<vmem>>) attributes {dimension_semantics = [#tpu.dimension_semantics<parallel>, #tpu.dimension_semantics<arbitrary>], iteration_bounds = array<i64: 2, 1>, scalar_prefetch = 0 : i64, scratch_operands = 0 : i64, tpu.core_type = #tpu.core_type<tc>, window_params = [{transform_indices = @transform_0, window_bounds = array<i64: 8, 32>}, {transform_indices = @transform_1, window_bounds = array<i64: 32, 128>}, {transform_indices = @transform_2, window_bounds = array<i64: 1, 128>}, {transform_indices = @transform_3, window_bounds = array<i64: 8, 128>}, {transform_indices = @transform_4, window_bounds = array<i64: 8, 1>}, {transform_indices = @transform_5, window_bounds = array<i64: 8, 1>}, {transform_indices = @transform_6, window_bounds = array<i64: 1, 8, 1>}]} {
    %c0_i32 = arith.constant 0 : i32
    %0 = arith.cmpi eq, %arg1, %c0_i32 : i32
    %1 = arith.extui %0 : i1 to i32
    %c0_i32_0 = arith.constant 0 : i32
    %2 = arith.cmpi ne, %1, %c0_i32_0 : i32
    scf.if %2 {
      %cst_22 = arith.constant -1.000000e+30 : f32
      %33 = vector.broadcast %cst_22 : f32 to vector<8x1xf32>
      %c0_23 = arith.constant 0 : index
      %c0_24 = arith.constant 0 : index
      %34 = vector.load %arg6[%c0_23, %c0_24] : memref<8x1xf32, #tpu.memory_space<vmem>>, vector<8x1xf32>
      tpu.vector_store %arg6[%c0_23, %c0_24], %33 {strides = array<i32>} : memref<8x1xf32, #tpu.memory_space<vmem>>, vector<8x1xf32>,
      %cst_25 = arith.constant 0.000000e+00 : f32
      %35 = vector.broadcast %cst_25 : f32 to vector<8x1xf32>
      %c0_26 = arith.constant 0 : index
      %c0_27 = arith.constant 0 : index
      %36 = vector.load %arg7[%c0_26, %c0_27] : memref<8x1xf32, #tpu.memory_space<vmem>>, vector<8x1xf32>
      tpu.vector_store %arg7[%c0_26, %c0_27], %35 {strides = array<i32>} : memref<8x1xf32, #tpu.memory_space<vmem>>, vector<8x1xf32>,
    } else {
    }
    %c0 = arith.constant 0 : index
    %c0_1 = arith.constant 0 : index
    %3 = vector.load %arg2[%c0, %c0_1] : memref<8x32xbf16, #tpu.memory_space<vmem>>, vector<8x32xbf16>
    %c0_2 = arith.constant 0 : index
    %c0_3 = arith.constant 0 : index
    %4 = vector.load %arg3[%c0_2, %c0_3] : memref<32x128xbf16, #tpu.memory_space<vmem>>, vector<32x128xbf16>
    %cst = arith.constant dense<0.000000e+00> : vector<8x128xf32>
    %5 = tpu.matmul %3, %4, %cst {dimension_numbers = #tpu.dot_dimension_numbers<[1], [0], [0], [1], [0, 0, 1, 1], [], []>} : vector<8x32xbf16>, vector<32x128xbf16>, vector<8x128xf32> -> vector<8x128xf32>
    %c0_4 = arith.constant 0 : index
    %c0_5 = arith.constant 0 : index
    %6 = vector.load %arg4[%c0_4, %c0_5] : memref<1x128xf32, #tpu.memory_space<vmem>>, vector<1x128xf32>
    %7 = vector.broadcast %6 : vector<1x128xf32> to vector<8x128xf32>
    %8 = arith.addf %5, %7 : vector<8x128xf32>
    %c0_6 = arith.constant 0 : index
    %c0_7 = arith.constant 0 : index
    %9 = vector.load %arg6[%c0_6, %c0_7] : memref<8x1xf32, #tpu.memory_space<vmem>>, vector<8x1xf32>
    %cst_8 = arith.constant dense<0xFF800000> : vector<8xf32>
    %10 = vector.multi_reduction <maximumf>, %8, %cst_8 [1] : vector<8x128xf32> to vector<8xf32>
    %11 = vector.shape_cast %10 : vector<8xf32> to vector<8x1xf32>
    %12 = arith.maximumf %9, %11 : vector<8x1xf32>
    %13 = vector.broadcast %12 : vector<8x1xf32> to vector<8x128xf32>
    %14 = arith.subf %8, %13 : vector<8x128xf32>
    %15 = math.exp %14 : vector<8x128xf32>
    %c0_9 = arith.constant 0 : index
    %c0_10 = arith.constant 0 : index
    %16 = vector.load %arg7[%c0_9, %c0_10] : memref<8x1xf32, #tpu.memory_space<vmem>>, vector<8x1xf32>
    %17 = arith.subf %9, %12 : vector<8x1xf32>
    %18 = math.exp %17 : vector<8x1xf32>
    %19 = arith.mulf %16, %18 : vector<8x1xf32>
    %cst_11 = arith.constant dense<0.000000e+00> : vector<8xf32>
    %20 = vector.multi_reduction <add>, %15, %cst_11 [1] : vector<8x128xf32> to vector<8xf32>
    %21 = vector.shape_cast %20 : vector<8xf32> to vector<8x1xf32>
    %22 = arith.addf %19, %21 : vector<8x1xf32>
    %c0_12 = arith.constant 0 : index
    %c0_13 = arith.constant 0 : index
    %23 = vector.load %arg7[%c0_12, %c0_13] : memref<8x1xf32, #tpu.memory_space<vmem>>, vector<8x1xf32>
    tpu.vector_store %arg7[%c0_12, %c0_13], %22 {strides = array<i32>} : memref<8x1xf32, #tpu.memory_space<vmem>>, vector<8x1xf32>,
    %c0_14 = arith.constant 0 : index
    %c0_15 = arith.constant 0 : index
    %24 = vector.load %arg6[%c0_14, %c0_15] : memref<8x1xf32, #tpu.memory_space<vmem>>, vector<8x1xf32>
    tpu.vector_store %arg6[%c0_14, %c0_15], %12 {strides = array<i32>} : memref<8x1xf32, #tpu.memory_space<vmem>>, vector<8x1xf32>,
    %25 = vector.shape_cast %12 : vector<8x1xf32> to vector<1x8x1xf32>
    %c0_16 = arith.constant 0 : index
    %c0_17 = arith.constant 0 : index
    %c0_18 = arith.constant 0 : index
    %26 = vector.load %arg8[%c0_16, %c0_17, %c0_18] : memref<1x8x1xf32, #tpu.memory_space<vmem>>, vector<1x8x1xf32>
    tpu.vector_store %arg8[%c0_16, %c0_17, %c0_18], %25 {strides = array<i32>} : memref<1x8x1xf32, #tpu.memory_space<vmem>>, vector<1x8x1xf32>,
    %cst_19 = arith.constant 1.000000e+00 : f32
    %27 = vector.broadcast %cst_19 : f32 to vector<8x1xf32>
    %28 = arith.divf %27, %22 : vector<8x1xf32>
    %29 = vector.broadcast %28 : vector<8x1xf32> to vector<8x128xf32>
    %30 = arith.mulf %15, %29 : vector<8x128xf32>
    %31 = arith.truncf %30 : vector<8x128xf32> to vector<8x128xbf16>
    %c0_20 = arith.constant 0 : index
    %c0_21 = arith.constant 0 : index
    %32 = vector.load %arg5[%c0_20, %c0_21] : memref<8x128xbf16, #tpu.memory_space<vmem>>, vector<8x128xbf16>
    tpu.vector_store %arg5[%c0_20, %c0_21], %31 {strides = array<i32>} : memref<8x128xbf16, #tpu.memory_space<vmem>>, vector<8x128xbf16>,
    return
  }
  func.func @transform_0(%arg0: i32, %arg1: i32) -> (i32, i32) {
    %c0_i32 = arith.constant 0 : i32
    %c0_i32_0 = arith.constant 0 : i32
    return %arg0, %c0_i32 : i32, i32
  }
  func.func @transform_1(%arg0: i32, %arg1: i32) -> (i32, i32) {
    %c0_i32 = arith.constant 0 : i32
    %c0_i32_0 = arith.constant 0 : i32
    return %c0_i32, %arg1 : i32, i32
  }
  func.func @transform_2(%arg0: i32, %arg1: i32) -> (i32, i32) {
    %c0_i32 = arith.constant 0 : i32
    %c0_i32_0 = arith.constant 0 : i32
    return %c0_i32, %arg1 : i32, i32
  }
  func.func @transform_3(%arg0: i32, %arg1: i32) -> (i32, i32) {
    %c0_i32 = arith.constant 0 : i32
    return %arg0, %arg1 : i32, i32
  }
  func.func @transform_4(%arg0: i32, %arg1: i32) -> (i32, i32) {
    %c0_i32 = arith.constant 0 : i32
    %c0_i32_0 = arith.constant 0 : i32
    return %arg0, %c0_i32 : i32, i32
  }
  func.func @transform_5(%arg0: i32, %arg1: i32) -> (i32, i32) {
    %c0_i32 = arith.constant 0 : i32
    %c0_i32_0 = arith.constant 0 : i32
    return %arg0, %c0_i32 : i32, i32
  }
  func.func @transform_6(%arg0: i32, %arg1: i32) -> (i32, i32, i32) {
    %c0_i32 = arith.constant 0 : i32
    %c0_i32_0 = arith.constant 0 : i32
    return %arg1, %arg0, %c0_i32 : i32, i32, i32
  }
}

</mosaic_0001>

<llo_original>
// kernel: generator_forward.1
$region0: #{generator_forward.1}
  #allocation0 [shape = 'u32[]', space=smem, size = 0x4, offset = 0x4, fixed_abs, tag = 'smem constant byte address 0x4 - core index']
  #allocation1 [shape = 'u32[144,128]{1,0:T(1,128)}', space=vmem, size = 0x12000, scoped, tag = 'internal scratch']
  %s0 = inlined_call_operand.vmem [shape: bf16[16,32], index: 0, kind: input, shape index: {}]
  %s1 = inlined_call_operand.vmem [shape: bf16[32,128], index: 1, kind: input, shape index: {}]
  %s2 = inlined_call_operand.vmem [shape: f32[1,128], index: 2, kind: input, shape index: {}]
  %s3 = inlined_call_operand.hbm [shape: bf16[16,128], index: 3, kind: output, shape index: {0}]
  %s4 = inlined_call_operand.hbm [shape: f32[16,1], index: 4, kind: output, shape index: {1}]
  %s5 = inlined_call_operand.hbm [shape: f32[16,1], index: 5, kind: output, shape index: {2}]
  %s6 = inlined_call_operand.hbm [shape: f32[1,16,1], index: 6, kind: output, shape index: {3}]
  %7 = xla_tuple %s3, %s4, %s5, %s6
  %s8 = sld [smem:[#allocation0]]
  $region73: #{generator_forward.1} parent=0
    _
  %s10 = ssub.s32 1, %s8
  %s11 = scalar_select 0, %s10, %s8
  $region1: #{generator_forward.1} parent=0
    #allocation2 [shape = 'u8[4096]{0}', space=vmem, size = 0x1000, scoped, tag = 'output window, operand 0']
    #allocation3 [shape = 's32[2]{0}', space=sflag, size = 0x8, scoped, tag = 'scoped memory for generator_forward.1']
    #allocation4 [shape = 'u8[8192]{0}', space=vmem, size = 0x2000, scoped, tag = 'output window, operand 1']
    #allocation5 [shape = 's32[2]{0}', space=sflag, size = 0x8, scoped, tag = 'scoped memory for generator_forward.1']
    #allocation6 [shape = 'u8[8192]{0}', space=vmem, size = 0x2000, scoped, tag = 'output window, operand 2']
    #allocation7 [shape = 'u8[8192]{0}', space=vmem, size = 0x2000, scoped, tag = 'output window, operand 3']
    #allocation8 [shape = 's32[2]{0}', space=sflag, size = 0x8, scoped, tag = 'scoped memory for generator_forward.1']
    %12 = vsyncpa [#allocation3], 0
    %s13 = scalar_lea.sflag [#allocation3], 1
    %14 = vsyncpa %s13, 0
    %15 = vsyncpa [#allocation5], 0
    %s16 = scalar_lea.sflag [#allocation5], 1
    %17 = vsyncpa %s16, 0
    %18 = vsyncpa [#allocation8], 0
    %s19 = scalar_lea.sflag [#allocation8], 1
    %20 = vsyncpa %s19, 0
    loop: start=0, step=1, limit=4
    $region2: #{generator_forward.1} parent=1 // loop_pre_header
      _
    $region3: #{generator_forward.1} parent=1 // loop_header
      %s22 = sphi 0, %s26
      %p23 = scmp.ge.s32.totalorder %s22, 4
      %s29 = sphi 0, %s41
      %s30 = sphi 0, %s37
      %s31 = sphi 0, %s29
      %s32 = sphi 0, %s30
      %s33 = sphi 0, %s31
      %s34 = sphi 0, %s32
      %s44 = sphi 0, %s46
      %s47 = sphi 0, %s44
      %s48 = sphi 0, %s47
      %s64 = sphi 0, %s48
      %s70 = sphi 0, %s72
      %s73 = sphi 0, %s70
      %s74 = sphi 0, %s73
      %s90 = sphi 0, %s74
      %s96 = sphi 0, %s98
      %s99 = sphi 0, %s96
      %s100 = sphi 0, %s99
      %s116 = sphi 0, %s100
      %s124 = sphi 0, %s126
      %s127 = sphi 0, %s124
      %s128 = sphi 0, %s127
      %s144 = sphi 0, %s128
      %s150 = sphi 0, %s152
      %s153 = sphi 0, %s150
      %s154 = sphi 0, %s153
      %s170 = sphi 0, %s154
      %s176 = sphi 0, %s178
      %s179 = sphi 0, %s176
      %s180 = sphi 0, %s179
      %s196 = sphi 0, %s180
      %s204 = sphi 0, %s206
      %s207 = sphi 0, %s204
      %s208 = sphi 0, %s207
      %s224 = sphi 0, %s208
    $region4: #{generator_forward.1} parent=1 // loop_header_branch
      %25 = sbr.rel (%p23) target = $region8
    $region5: #{generator_forward.1} parent=1 // loop_body
      %s27 = ssub.s32 %s22, 1
      %s28 = ssub.s32 %s22, 2
      %s35 = sadd.s32 1, %s30
      %p36 = scmp.ge.s32.totalorder %s35, 1
      %s37 = scalar_select %p36, 0, %s35
      %s38 = sadd.s32 1, %s29
      %s39 = scalar_select %p36, %s38, %s29
      %p40 = scmp.ge.s32.totalorder %s39, 2
      %s41 = scalar_select %p40, 0, %s39
      %s42 = ssub.s32 %s29, %s41
      %p43 = scmp.eq.s32.totalorder %s42, 0
      %s45 = sadd.s32 %s44, 1
      %s46 = scalar_select %p43, %s44, %s45
      %p49 = pneg %p43
      %p50 = scmp.eq.s32.totalorder %s22, 1
      %p51 = por %p49, %p50
      %p52 = scmp.ne.s32.totalorder %s44, %s47
      %p53 = scmp.eq.s32.totalorder %s22, 0
      %p54 = por %p52, %p53
      %p55 = scmp.ne.s32.totalorder %s44, %s47
      %p56 = scmp.eq.s32.totalorder %s27, 1
      %p57 = por %p55, %p56
      %p58 = scmp.ne.s32.totalorder %s47, %s48
      %p59 = scmp.eq.s32.totalorder %s27, 0
      %p60 = por %p58, %p59
      %p61 = scmp.ne.s32.totalorder %s47, %s48
      %p62 = scmp.eq.s32.totalorder %s28, 1
      %p63 = por %p61, %p62
      %p65 = scmp.ne.s32.totalorder %s48, %s64
      %p66 = scmp.eq.s32.totalorder %s28, 0
      %p67 = por %p65, %p66
      %s68 = ssub.s32 %s30, %s37
      %p69 = scmp.eq.s32.totalorder %s68, 0
      %s71 = sadd.s32 %s70, 1
      %s72 = scalar_select %p69, %s70, %s71
      %p75 = pneg %p69
      %p76 = scmp.eq.s32.totalorder %s22, 1
      %p77 = por %p75, %p76
      %p78 = scmp.ne.s32.totalorder %s70, %s73
      %p79 = scmp.eq.s32.totalorder %s22, 0
      %p80 = por %p78, %p79
      %p81 = scmp.ne.s32.totalorder %s70, %s73
      %p82 = scmp.eq.s32.totalorder %s27, 1
      %p83 = por %p81, %p82
      %p84 = scmp.ne.s32.totalorder %s73, %s74
      %p85 = scmp.eq.s32.totalorder %s27, 0
      %p86 = por %p84, %p85
      %p87 = scmp.ne.s32.totalorder %s73, %s74
      %p88 = scmp.eq.s32.totalorder %s28, 1
      %p89 = por %p87, %p88
      %p91 = scmp.ne.s32.totalorder %s74, %s90
      %p92 = scmp.eq.s32.totalorder %s28, 0
      %p93 = por %p91, %p92
      %s94 = ssub.s32 %s30, %s37
      %p95 = scmp.eq.s32.totalorder %s94, 0
      %s97 = sadd.s32 %s96, 1
      %s98 = scalar_select %p95, %s96, %s97
      %p101 = pneg %p95
      %p102 = scmp.eq.s32.totalorder %s22, 1
      %p103 = por %p101, %p102
      %p104 = scmp.ne.s32.totalorder %s96, %s99
      %p105 = scmp.eq.s32.totalorder %s22, 0
      %p106 = por %p104, %p105
      %p107 = scmp.ne.s32.totalorder %s96, %s99
      %p108 = scmp.eq.s32.totalorder %s27, 1
      %p109 = por %p107, %p108
      %p110 = scmp.ne.s32.totalorder %s99, %s100
      %p111 = scmp.eq.s32.totalorder %s27, 0
      %p112 = por %p110, %p111
      %p113 = scmp.ne.s32.totalorder %s99, %s100
      %p114 = scmp.eq.s32.totalorder %s28, 1
      %p115 = por %p113, %p114
      %p117 = scmp.ne.s32.totalorder %s100, %s116
      %p118 = scmp.eq.s32.totalorder %s28, 0
      %p119 = por %p117, %p118
      %s120 = ssub.s32 %s29, %s41
      %s121 = ssub.s32 %s30, %s37
      %s122 = sor.u32 %s120, %s121
      %p123 = scmp.eq.s32.totalorder %s122, 0
      %s125 = sadd.s32 %s124, 1
      %s126 = scalar_select %p123, %s124, %s125
      %p129 = pneg %p123
      %p130 = scmp.eq.s32.totalorder %s22, 1
      %p131 = por %p129, %p130
      %p132 = scmp.ne.s32.totalorder %s124, %s127
      %p133 = scmp.eq.s32.totalorder %s22, 0
      %p134 = por %p132, %p133
      %p135 = scmp.ne.s32.totalorder %s124, %s127
      %p136 = scmp.eq.s32.totalorder %s27, 1
      %p137 = por %p135, %p136
      %p138 = scmp.ne.s32.totalorder %s127, %s128
      %p139 = scmp.eq.s32.totalorder %s27, 0
      %p140 = por %p138, %p139
      %p141 = scmp.ne.s32.totalorder %s127, %s128
      %p142 = scmp.eq.s32.totalorder %s28, 1
      %p143 = por %p141, %p142
      %p145 = scmp.ne.s32.totalorder %s128, %s144
      %p146 = scmp.eq.s32.totalorder %s28, 0
      %p147 = por %p145, %p146
      %s148 = ssub.s32 %s29, %s41
      %p149 = scmp.eq.s32.totalorder %s148, 0
      %s151 = sadd.s32 %s150, 1
      %s152 = scalar_select %p149, %s150, %s151
      %p155 = pneg %p149
      %p156 = scmp.eq.s32.totalorder %s22, 1
      %p157 = por %p155, %p156
      %p158 = scmp.ne.s32.totalorder %s150, %s153
      %p159 = scmp.eq.s32.totalorder %s22, 0
      %p160 = por %p158, %p159
      %p161 = scmp.ne.s32.totalorder %s150, %s153
      %p162 = scmp.eq.s32.totalorder %s27, 1
      %p163 = por %p161, %p162
      %p164 = scmp.ne.s32.totalorder %s153, %s154
      %p165 = scmp.eq.s32.totalorder %s27, 0
      %p166 = por %p164, %p165
      %p167 = scmp.ne.s32.totalorder %s153, %s154
      %p168 = scmp.eq.s32.totalorder %s28, 1
      %p169 = por %p167, %p168
      %p171 = scmp.ne.s32.totalorder %s154, %s170
      %p172 = scmp.eq.s32.totalorder %s28, 0
      %p173 = por %p171, %p172
      %s174 = ssub.s32 %s29, %s41
      %p175 = scmp.eq.s32.totalorder %s174, 0
      %s177 = sadd.s32 %s176, 1
      %s178 = scalar_select %p175, %s176, %s177
      %p181 = pneg %p175
      %p182 = scmp.eq.s32.totalorder %s22, 1
      %p183 = por %p181, %p182
      %p184 = scmp.ne.s32.totalorder %s176, %s179
      %p185 = scmp.eq.s32.totalorder %s22, 0
      %p186 = por %p184, %p185
      %p187 = scmp.ne.s32.totalorder %s176, %s179
      %p188 = scmp.eq.s32.totalorder %s27, 1
      %p189 = por %p187, %p188
      %p190 = scmp.ne.s32.totalorder %s179, %s180
      %p191 = scmp.eq.s32.totalorder %s27, 0
      %p192 = por %p190, %p191
      %p193 = scmp.ne.s32.totalorder %s179, %s180
      %p194 = scmp.eq.s32.totalorder %s28, 1
      %p195 = por %p193, %p194
      %p197 = scmp.ne.s32.totalorder %s180, %s196
      %p198 = scmp.eq.s32.totalorder %s28, 0
      %p199 = por %p197, %p198
      %s200 = ssub.s32 %s30, %s37
      %s201 = ssub.s32 %s29, %s41
      %s202 = sor.u32 %s200, %s201
      %p203 = scmp.eq.s32.totalorder %s202, 0
      %s205 = sadd.s32 %s204, 1
      %s206 = scalar_select %p203, %s204, %s205
      %p209 = pneg %p203
      %p210 = scmp.eq.s32.totalorder %s22, 1
      %p211 = por %p209, %p210
      %p212 = scmp.ne.s32.totalorder %s204, %s207
      %p213 = scmp.eq.s32.totalorder %s22, 0
      %p214 = por %p212, %p213
      %p215 = scmp.ne.s32.totalorder %s204, %s207
      %p216 = scmp.eq.s32.totalorder %s27, 1
      %p217 = por %p215, %p216
      %p218 = scmp.ne.s32.totalorder %s207, %s208
      %p219 = scmp.eq.s32.totalorder %s27, 0
      %p220 = por %p218, %p219
      %p221 = scmp.ne.s32.totalorder %s207, %s208
      %p222 = scmp.eq.s32.totalorder %s28, 1
      %p223 = por %p221, %p222
      %p225 = scmp.ne.s32.totalorder %s208, %s224
      %p226 = scmp.eq.s32.totalorder %s28, 0
      %p227 = por %p225, %p226
      %p228 = scmp.le.s32.totalorder 1, %s22
      %p229 = scmp.lt.s32.totalorder %s22, 3
      %p230 = pnand %p228, %p229
      %p231 = pneg %p230
      // Predicated region
      $region9: #{generator_forward.1} parent=5 // pred_check
        _
      $region10: #{generator_forward.1} parent=5 // pred_check_branch
        %233 = sbr.rel (%p230) target = $region12
      $region11: #{generator_forward.1} parent=5 // pred_region
        %s234 = ssub.s32 %s22, 1
        // Predicated region
        $region13: #{generator_forward.1} parent=11 // pred_check
          %p235 = pneg %p86
        $region14: #{generator_forward.1} parent=11 // pred_check_branch
          %237 = sbr.rel (%p235) target = $region16
        $region15: #{generator_forward.1} parent=11 // pred_region
          %p238 = scmp.lt.s32.totalorder %s32, 0
          %s239 = scalar_select %p238, %s32, 0
          %s240 = smul.addr %s239, 4
          %s241 = scalar_lea.vmem %s1, %s240
        $region16: #{generator_forward.1} parent=11 // pred_fallthru
          _
        // Predicated region
        $region17: #{generator_forward.1} parent=11 // pred_check
          %p242 = pneg %p112
        $region18: #{generator_forward.1} parent=11 // pred_check_branch
          %244 = sbr.rel (%p242) target = $region20
        $region19: #{generator_forward.1} parent=11 // pred_region
          %p245 = scmp.lt.s32.totalorder %s32, 0
          %s246 = scalar_select %p245, %s32, 0
          %s247 = scalar_lea.vmem %s2, %s246
        $region20: #{generator_forward.1} parent=11 // pred_fallthru
          _
      $region12: #{generator_forward.1} parent=5 // pred_fallthru
        _
      %p248 = scmp.lt.s32.totalorder %s22, 2
      // Predicated region
      $region21: #{generator_forward.1} parent=5 // pred_check
        %p249 = pneg %p248
      $region22: #{generator_forward.1} parent=5 // pred_check_branch
        %251 = sbr.rel (%p249) target = $region24
      $region23: #{generator_forward.1} parent=5 // pred_region
        // Predicated region
        $region25: #{generator_forward.1} parent=23 // pred_check
          %p252 = pneg %p54
        $region26: #{generator_forward.1} parent=23 // pred_check_branch
          %254 = sbr.rel (%p252) target = $region28
        $region27: #{generator_forward.1} parent=23 // pred_region
          %p255 = scmp.lt.s32.totalorder %s29, 1
          %s256 = scalar_select %p255, %s29, 1
          %s257 = smul.addr %s256, 4
          %s258 = scalar_lea.vmem %s0, %s257
        $region28: #{generator_forward.1} parent=23 // pred_fallthru
          _
      $region24: #{generator_forward.1} parent=5 // pred_fallthru
        _
      %p259 = scmp.le.s32.totalorder 1, %s22
      %p260 = scmp.lt.s32.totalorder %s22, 3
      %p261 = pnand %p259, %p260
      %p262 = pneg %p261
      // Predicated region
      $region29: #{generator_forward.1} parent=5 // pred_check
        _
      $region30: #{generator_forward.1} parent=5 // pred_check_branch
        %264 = sbr.rel (%p261) target = $region32
      $region31: #{generator_forward.1} parent=5 // pred_region
        %s265 = ssub.s32 %s22, 1
        %p266 = scmp.lt.s32.totalorder %s31, 1
        %s267 = scalar_select %p266, %s31, 1
        %s268 = smul.addr %s267, 4
        %s269 = scalar_lea.vmem %s0, %s268
        %p270 = pneg %p60
        %p271 = pneg %p57
        %p272 = scmp.lt.s32.totalorder %s32, 0
        %s273 = scalar_select %p272, %s32, 0
        %s274 = smul.addr %s273, 4
        %s275 = scalar_lea.vmem %s1, %s274
        %p276 = pneg %p86
        %p277 = pneg %p83
        %p278 = scmp.lt.s32.totalorder %s32, 0
        %s279 = scalar_select %p278, %s32, 0
        %s280 = scalar_lea.vmem %s2, %s279
        %p281 = pneg %p112
        %p282 = pneg %p109
        %p283 = pneg %p140
        %p284 = pneg %p137
        %s285 = sand.u32 %s127, 1
        %s286 = scalar_lea.sflag [#allocation3], %s285
        %s287 = sand.u32 %s127, 1
        %s288 = smul.addr %s287, 4
        %s289 = scalar_lea.vmem [#allocation2], %s288
        %p290 = pneg %p166
        %p291 = pneg %p163
        %s292 = sand.u32 %s27, 1
        %s293 = scalar_lea.sflag [#allocation5], %s292
        %s294 = sand.u32 %s153, 1
        %s295 = smul.addr %s294, 8
        %s296 = scalar_lea.vmem [#allocation4], %s295
        %p297 = pneg %p192
        %p298 = pneg %p189
        %s299 = sand.u32 %s27, 1
        %s300 = scalar_lea.sflag [#allocation5], %s299
        %s301 = sand.u32 %s179, 1
        %s302 = smul.addr %s301, 8
        %s303 = scalar_lea.vmem [#allocation6], %s302
        %p304 = pneg %p220
        %p305 = pneg %p217
        %s306 = sand.u32 %s207, 1
        %s307 = scalar_lea.sflag [#allocation8], %s306
        %s308 = sand.u32 %s207, 1
        %s309 = smul.addr %s308, 8
        %s310 = scalar_lea.vmem [#allocation7], %s309
        %p311 = scmp.lt.s32.totalorder %s31, 1
        %s312 = scalar_select %p311, %s31, 1
        %s313 = smul.addr %s312, 4
        %s314 = scalar_lea.vmem %s0, %s313
        %p315 = scmp.lt.s32.totalorder %s32, 0
        %s316 = scalar_select %p315, %s32, 0
        %s317 = smul.addr %s316, 4
        %s318 = scalar_lea.vmem %s1, %s317
        %p319 = scmp.lt.s32.totalorder %s32, 0
        %s320 = scalar_select %p319, %s32, 0
        %s321 = scalar_lea.vmem %s2, %s320
        %p323 = scmp.eq.s32.totalorder %s32, 0
        // Predicated region
        $region33: #{generator_forward.1} parent=31 // pred_check
          %p324 = pneg %p323
        $region34: #{generator_forward.1} parent=31 // pred_check_branch
          %326 = sbr.rel (%p324) target = $region36
        $region35: #{generator_forward.1} parent=31 // pred_region
          %vm327 = vcmask 7168
          %328 = vst.msk [vmem:[%s296] sm:$0xff] %vm327, -1e+30
          %329 = vst.msk [vmem:[%s303] sm:$0xff] %vm327, 0.0
        $region36: #{generator_forward.1} parent=31 // pred_fallthru
          _
        %v330 = vld [vmem:[%s314] sm:$0xf]
        %v331 = vld [vmem:[%s318] sm:$0xf]
        %v332 = vld [vmem:[%s318 + $0x4] sm:$0xf]
        %v333 = vld [vmem:[%s318 + $0x8] sm:$0xf]
        %v334 = vld [vmem:[%s318 + $0xc] sm:$0xf]
        %v335 = vld [vmem:[%s321] sm:$0x1]
        %v337 = vlaneseq
        %v338 = vshrl.u32 %v337, 7
        %v339 = vsub.s32 0, %v338
        %v340 = vrot.slane %v335, %v339
        %v346 = vunpack.c.l.b16 %v331
        %v347 = vunpack.c.l.b16 %v332
        %v348 = vunpack.c.l.b16 %v333
        %v349 = vunpack.c.l.b16 %v334
        %v350 = vpack.c.b16 %v347, %v346
        %v351 = vpack.c.b16 %v349, %v348
        %vm354 = vcmask 261120
        %v356 = vsel %vm354, %v330, 0
        %358 = vmatprep.subr.bf16.mxu0 0
        %359 = vmatpush1.bf16.msra.mxu0 %v350
        %360 = vmatprep.subr.bf16.mxu0 0
        %361 = vmatpush1.bf16.msra.mxu0 %v351
        %362 = vmatprep.subr.bf16.mxu0 0
        %363 = vmatpush1.bf16.msra.mxu0 0
        %364 = vmatprep.subr.bf16.mxu0 0
        %365 = vmatpush1.bf16.msra.mxu0 0
        %366 = vmatprep.subr.bf16.mxu0 0
        %367 = vmatpush1.bf16.msra.mxu0 0
        %368 = vmatprep.subr.bf16.mxu0 0
        %369 = vmatpush1.bf16.msra.mxu0 0
        %370 = vmatprep.subr.bf16.mxu0 0
        %371 = vmatpush1.bf16.msra.mxu0 0
        %372 = vmatprep.subr.bf16.mxu0 0
        %373 = vmatpush1.bf16.msra.mxu0 0
        %374 = vmatprep.subr.bf16.mxu0 0
        %375 = vmatpush1.bf16.msra.mxu0 0
        %376 = vmatprep.subr.bf16.mxu0 0
        %377 = vmatpush1.bf16.msra.mxu0 0
        %378 = vmatprep.subr.bf16.mxu0 0
        %379 = vmatpush1.bf16.msra.mxu0 0
        %380 = vmatprep.subr.bf16.mxu0 0
        %381 = vmatpush1.bf16.msra.mxu0 0
        %382 = vmatprep.subr.bf16.mxu0 0
        %383 = vmatpush1.bf16.msra.mxu0 0
        %384 = vmatprep.subr.bf16.mxu0 0
        %385 = vmatpush1.bf16.msra.mxu0 0
        %386 = vmatprep.subr.bf16.mxu0 0
        %387 = vmatpush1.bf16.msra.mxu0 0
        %388 = vmatprep.subr.bf16.mxu0 0
        %389 = vmatpush1.bf16.msra.mxu0 0
        %390 = vmatprep.mubr.bf16.mxu0 0
        %391 = vmatmul.mubr.bf16.gmra.mrb[0].mxu0 %v356
        %v392 = vpop.f32.mrb[0].mxu0
        %v393 = vadd.f32 %v340, %v392
        %v394 = vpop.f32.mrb[0].mxu0
        %v395 = vpop.f32.mrb[0].mxu0
        %v396 = vpop.f32.mrb[0].mxu0
        %397 = vdwg.mxu0
        %v398 = vld [vmem:[%s296] sm:$0xff]
        %399 = vmax.xlane.f32.xlu0 %v393
        %v400 = vpop.xlane.xlu0 %399
        %v401 = vmax.f32 %v398, %v400
        %403 = vset.pattern.permute.xlu0 0
        %404 = vperm.xlu0 %403, %v401
        %v405 = vpop.permute.xlu0 %404
        %v407 = vsub.f32 %v393, %v405
        %v408 = vmul.f32 %v407, 1.442695
        %v409 = vpow.pop %v408
        %v410 = vld [vmem:[%s303] sm:$0xff]
        %v411 = vsub.f32 %v398, %v401
        %v412 = vmul.f32 %v411, 1.442695
        %v413 = vpow.pop %v412
        %v414 = vmul.f32 %v410, %v413
        %415 = vadd.xlane.f32.xlu0 %v409
        %v416 = vpop.xlane.xlu0 %415
        %v417 = vadd.f32 %v414, %v416
        %vm418 = vcmask 7168
        %419 = vst.msk [vmem:[%s303] sm:$0xff] %vm418, %v417
        %420 = vst.msk [vmem:[%s296] sm:$0xff] %vm418, %v401
        %421 = vst.msk [vmem:[%s310] sm:$0xff] %vm418, %v401
        %v422 = vrcp.pop %v417
        %v423 = vmul.f32 1.0, %v422
        %425 = vset.pattern.permute.xlu0 0
        %426 = vperm.xlu0 %425, %v423
        %v427 = vpop.permute.xlu0 %426
        %v429 = vmul.f32 %v409, %v427
        %v430 = vpack.c.bf16 %v429, %v429
        %431 = vst [vmem:[%s289] sm:$0xf] %v430
        %s432 = sand.u32 %s127, 1
        %s433 = scalar_lea.sflag [#allocation3], %s432
        %s434 = sand.u32 %s127, 1
        %s435 = smul.addr %s434, 4
        %s436 = scalar_lea.vmem [#allocation2], %s435
        %s437 = sand.u32 %s27, 1
        %s438 = scalar_lea.sflag [#allocation5], %s437
        %s439 = sand.u32 %s153, 1
        %s440 = smul.addr %s439, 8
        %s441 = scalar_lea.vmem [#allocation4], %s440
        %s442 = sand.u32 %s27, 1
        %s443 = scalar_lea.sflag [#allocation5], %s442
        %s444 = sand.u32 %s179, 1
        %s445 = smul.addr %s444, 8
        %s446 = scalar_lea.vmem [#allocation6], %s445
        %s447 = sand.u32 %s207, 1
        %s448 = scalar_lea.sflag [#allocation8], %s447
        %s449 = sand.u32 %s207, 1
        %s450 = smul.addr %s449, 8
        %s451 = scalar_lea.vmem [#allocation7], %s450
        // Predicated region
        $region37: #{generator_forward.1} parent=31 // pred_check
          %p452 = pneg %p137
        $region38: #{generator_forward.1} parent=31 // pred_check_branch
          %454 = sbr.rel (%p452) target = $region40
        $region39: #{generator_forward.1} parent=31 // pred_region
          %s456 = ssub.s32 64, 64
          %457 = vsyncadd %s433, %s456
          %s458 = sadd.s32 %s32, %s31
          %s459 = smul.addr %s458, 64
          %s460 = scalar_lea.hbm %s3, %s459
          %s462 = sshll.u32 %s436, 4
          %s463 = int_to_ptr.vmem [resolvable:$true] %s462
          %465 = dma.vmem_to_hbm [thread:$0]  %s463, 64, %s460, %s433
        $region40: #{generator_forward.1} parent=31 // pred_fallthru
          _
        // Predicated region
        $region41: #{generator_forward.1} parent=31 // pred_check
          %p466 = pneg %p163
        $region42: #{generator_forward.1} parent=31 // pred_check_branch
          %468 = sbr.rel (%p466) target = $region44
        $region43: #{generator_forward.1} parent=31 // pred_region
          %s470 = ssub.s32 128, 128
          %471 = vsyncadd %s438, %s470
          %s472 = smul.addr %s31, 128
          %s473 = scalar_lea.hbm %s4, %s472
          %s475 = sshll.u32 %s441, 4
          %s476 = int_to_ptr.vmem [resolvable:$true] %s475
          %478 = dma.vmem_to_hbm [thread:$0]  %s476, 128, %s473, %s438
        $region44: #{generator_forward.1} parent=31 // pred_fallthru
          _
        // Predicated region
        $region45: #{generator_forward.1} parent=31 // pred_check
          %p479 = pneg %p189
        $region46: #{generator_forward.1} parent=31 // pred_check_branch
          %481 = sbr.rel (%p479) target = $region48
        $region47: #{generator_forward.1} parent=31 // pred_region
          %s483 = ssub.s32 128, 128
          %484 = vsyncadd %s443, %s483
          %s485 = smul.addr %s31, 128
          %s486 = scalar_lea.hbm %s5, %s485
          %s488 = sshll.u32 %s446, 4
          %s489 = int_to_ptr.vmem [resolvable:$true] %s488
          %491 = dma.vmem_to_hbm [thread:$0]  %s489, 128, %s486, %s443
        $region48: #{generator_forward.1} parent=31 // pred_fallthru
          _
        // Predicated region
        $region49: #{generator_forward.1} parent=31 // pred_check
          %p492 = pneg %p217
        $region50: #{generator_forward.1} parent=31 // pred_check_branch
          %494 = sbr.rel (%p492) target = $region52
        $region51: #{generator_forward.1} parent=31 // pred_region
          %s496 = ssub.s32 128, 128
          %497 = vsyncadd %s448, %s496
          %s498 = smul.addr %s32, 2
          %s499 = sadd.s32 %s31, %s498
          %s500 = smul.addr %s499, 128
          %s501 = scalar_lea.hbm %s6, %s500
          %s503 = sshll.u32 %s451, 4
          %s504 = int_to_ptr.vmem [resolvable:$true] %s503
          %506 = dma.vmem_to_hbm [thread:$0]  %s504, 128, %s501, %s448
        $region52: #{generator_forward.1} parent=31 // pred_fallthru
          _
      $region32: #{generator_forward.1} parent=5 // pred_fallthru
        _
      %p507 = scmp.le.s32.totalorder 2, %s22
      // Predicated region
      $region53: #{generator_forward.1} parent=5 // pred_check
        %p508 = pneg %p507
      $region54: #{generator_forward.1} parent=5 // pred_check_branch
        %510 = sbr.rel (%p508) target = $region56
      $region55: #{generator_forward.1} parent=5 // pred_region
        %s511 = ssub.s32 %s22, 2
        // Predicated region
        $region57: #{generator_forward.1} parent=55 // pred_check
          %p512 = pneg %p143
        $region58: #{generator_forward.1} parent=55 // pred_check_branch
          %514 = sbr.rel (%p512) target = $region60
        $region59: #{generator_forward.1} parent=55 // pred_region
          %s515 = sand.u32 %s128, 1
          %s516 = scalar_lea.sflag [#allocation3], %s515
          %s517 = sand.u32 %s128, 1
          %s518 = smul.addr %s517, 4
          %s519 = scalar_lea.vmem [#allocation2], %s518
          %520 = dma.done %s516, 64
        $region60: #{generator_forward.1} parent=55 // pred_fallthru
          _
        // Predicated region
        $region61: #{generator_forward.1} parent=55 // pred_check
          %p521 = pneg %p169
        $region62: #{generator_forward.1} parent=55 // pred_check_branch
          %523 = sbr.rel (%p521) target = $region64
        $region63: #{generator_forward.1} parent=55 // pred_region
          %s524 = sand.u32 %s28, 1
          %s525 = scalar_lea.sflag [#allocation5], %s524
          %s526 = sand.u32 %s154, 1
          %s527 = smul.addr %s526, 8
          %s528 = scalar_lea.vmem [#allocation4], %s527
          %529 = dma.done %s525, 128
        $region64: #{generator_forward.1} parent=55 // pred_fallthru
          _
        // Predicated region
        $region65: #{generator_forward.1} parent=55 // pred_check
          %p530 = pneg %p195
        $region66: #{generator_forward.1} parent=55 // pred_check_branch
          %532 = sbr.rel (%p530) target = $region68
        $region67: #{generator_forward.1} parent=55 // pred_region
          %s533 = sand.u32 %s28, 1
          %s534 = scalar_lea.sflag [#allocation5], %s533
          %s535 = sand.u32 %s180, 1
          %s536 = smul.addr %s535, 8
          %s537 = scalar_lea.vmem [#allocation6], %s536
          %538 = dma.done %s534, 128
        $region68: #{generator_forward.1} parent=55 // pred_fallthru
          _
        // Predicated region
        $region69: #{generator_forward.1} parent=55 // pred_check
          %p539 = pneg %p223
        $region70: #{generator_forward.1} parent=55 // pred_check_branch
          %541 = sbr.rel (%p539) target = $region72
        $region71: #{generator_forward.1} parent=55 // pred_region
          %s542 = sand.u32 %s208, 1
          %s543 = scalar_lea.sflag [#allocation8], %s542
          %s544 = sand.u32 %s208, 1
          %s545 = smul.addr %s544, 8
          %s546 = scalar_lea.vmem [#allocation7], %s545
          %547 = dma.done %s543, 128
        $region72: #{generator_forward.1} parent=55 // pred_fallthru
          _
      $region56: #{generator_forward.1} parent=5 // pred_fallthru
        _
    $region6: #{generator_forward.1} parent=1 // loop_footer
      %s26 = sadd.s32 1, %s22
    $region7: #{generator_forward.1} parent=1 // loop_footer_branch
      %21 = sbr.rel target = $region3
    $region8: #{generator_forward.1} parent=1 // loop_exit
      _
    %548 = vsyncpa [#allocation3], 1
    %s549 = scalar_lea.sflag [#allocation3], 1
    %550 = vsyncpa %s549, 1
    %551 = vsyncpa [#allocation5], 1
    %s552 = scalar_lea.sflag [#allocation5], 1
    %553 = vsyncpa %s552, 1
    %554 = vsyncpa [#allocation8], 1
    %s555 = scalar_lea.sflag [#allocation8], 1
    %556 = vsyncpa %s555, 1

</llo_original>
